<compile_context>
chip_gen: v6e
topology: v6e:2x2x1
jax: 0.10.0
libtpu: 0.0.40
codegen_flags: <defaults>
</compile_context>

<pallas_src>
import jax
import jax.numpy as jnp
from jax.experimental import pallas as pl
from jax.experimental.pallas import tpu as pltpu

# ---- model hyper-parameters -------------------------------------------------
INPUT_SIZE = 16                     # insample length (backcast size)
H = 32                              # hidden width: mlp_units = [[32, 32], [32, 32]]
FORECAST_SIZE = 12
N_THETA = INPUT_SIZE + FORECAST_SIZE
DROPOUT_PROB = 0.0

LANE = 128                          # lane width for the packed parameter buffers

# Packed-weight row offsets (all multiples of 8 -> sublane-tile aligned views).
_W0_OFF, _W0_ROWS = 0, INPUT_SIZE                    # w0        : (16, 128)
_W1_OFF, _W1_ROWS = _W0_OFF + _W0_ROWS, H            # w1        : (32, 128)
_W2_OFF, _W2_ROWS = _W1_OFF + _W1_ROWS, H            # w2        : (32, 128)
_W3B_OFF, _W3B_ROWS = _W2_OFF + _W2_ROWS, H          # w3 (back) : (32, 128)
_W3F_OFF, _W3F_ROWS = _W3B_OFF + _W3B_ROWS, H        # w3 (fcst) : (32, 128)
_W_TOTAL_ROWS = _W3F_OFF + _W3F_ROWS                 # 144 rows total


def nbeats_block_kernel(x_ref, wp_ref, bp_ref, backcast_ref, forecast_ref):
    """One batch tile of the N-BEATS block MLP; narrow lane-0-aligned outputs."""
    x = x_ref[...]                                            # (TILE, 16)

    # Static, sublane-aligned views into the packed parameter buffers.
    w0 = wp_ref[_W0_OFF:_W0_OFF + _W0_ROWS, :]                # (16, 128)
    w1 = wp_ref[_W1_OFF:_W1_OFF + _W1_ROWS, :]                # (32, 128)
    w2 = wp_ref[_W2_OFF:_W2_OFF + _W2_ROWS, :]                # (32, 128)
    w3b = wp_ref[_W3B_OFF:_W3B_OFF + _W3B_ROWS, :]            # (32, 128)
    w3f = wp_ref[_W3F_OFF:_W3F_OFF + _W3F_ROWS, :]            # (32, 128)
    b = bp_ref[...]                                           # (8, 128)
    b0, b1, b2 = b[0:1, :], b[1:2, :], b[2:3, :]
    b3b, b3f = b[3:4, :], b[4:5, :]

    # L0: Linear(input_size -> H)   (no activation, per reference code)
    h = jnp.dot(x, w0, preferred_element_type=jnp.float32) + b0            # (TILE, 128)
    # L1: Linear(H -> H) + ReLU   (only lanes 0..H-1 carry real data)
    h = jnp.maximum(
        jnp.dot(h[:, :H], w1, preferred_element_type=jnp.float32) + b1, 0.0)
    # L2: Linear(H -> H) + ReLU
    h = jnp.maximum(
        jnp.dot(h[:, :H], w2, preferred_element_type=jnp.float32) + b2, 0.0)
    h = h[:, :H]                                                            # (TILE, 32)

    # Output layer split into backcast / forecast column groups so both
    # results start at lane 0 (no cross-lane shift before the stores).
    tb = jnp.dot(h, w3b, preferred_element_type=jnp.float32) + b3b          # (TILE, 128)
    tf = jnp.dot(h, w3f, preferred_element_type=jnp.float32) + b3f          # (TILE, 128)

    backcast_ref[...] = tb[:, :INPUT_SIZE]                                  # (TILE, 16)
    forecast_ref[...] = tf[:, :FORECAST_SIZE]                               # (TILE, 12)


def pack_params(p):
    """Pack the 8 weight/bias arrays into 2 lane-padded buffers (done once)."""
    def pad_w(w, rows):
        r, c = w.shape
        return jnp.pad(w, ((0, rows - r), (0, LANE - c)))

    w3 = p["w3"]                                          # (H, N_THETA)
    w_packed = jnp.concatenate(
        [pad_w(p["w0"], _W0_ROWS),
         pad_w(p["w1"], _W1_ROWS),
         pad_w(p["w2"], _W2_ROWS),
         pad_w(w3[:, :INPUT_SIZE], _W3B_ROWS),            # backcast columns
         pad_w(w3[:, INPUT_SIZE:], _W3F_ROWS)],           # forecast columns
        axis=0).astype(jnp.float32)                       # (144, 128)

    def pad_b(bb):
        return jnp.pad(bb, ((0, 0), (0, LANE - bb.shape[1])))

    b3 = p["b3"]                                          # (1, N_THETA)
    b_packed = jnp.concatenate(
        [pad_b(p["b0"]), pad_b(p["b1"]), pad_b(p["b2"]),
         pad_b(b3[:, :INPUT_SIZE]), pad_b(b3[:, INPUT_SIZE:]),
         jnp.zeros((3, LANE), jnp.float32)],              # sublane pad to 8 rows
        axis=0).astype(jnp.float32)                       # (8, 128)
    return w_packed, b_packed


def _round_up(n, m):
    return ((n + m - 1) // m) * m


def _choose_batch_tile(bsz, batch_tile):
    """Sublane-aligned tile, capped at ~B/2 so the parallel grid has >=2 steps
    (v7x: 2 TensorCores); prefer a tile that divides B to avoid padding x."""
    tile = min(batch_tile, max(8, _round_up(max(bsz // 2, 1), 8)))
    if bsz % tile:
        for t in range(tile, 7, -8):
            if bsz % t == 0:
                return t
    return tile


def nbeats_block(x, w_packed, b_packed, *, batch_tile=1024):
    """x: (B, INPUT_SIZE) f32.
    Returns (backcast (B, INPUT_SIZE), forecast (B, FORECAST_SIZE))."""
    x = x.astype(jnp.float32)
    bsz = x.shape[0]
    tile = _choose_batch_tile(bsz, batch_tile)
    pad = (-bsz) % tile
    if pad:
        # TODO(synk): ragged tail could use a masked last tile instead of padding.
        x = jnp.pad(x, ((0, pad), (0, 0)))
    bp = bsz + pad
    grid = (bp // tile,)

    backcast, forecast = pl.pallas_call(
        nbeats_block_kernel,
        out_shape=(jax.ShapeDtypeStruct((bp, INPUT_SIZE), jnp.float32),
                   jax.ShapeDtypeStruct((bp, FORECAST_SIZE), jnp.float32)),
        grid_spec=pltpu.PrefetchScalarGridSpec(
            num_scalar_prefetch=0,
            grid=grid,
            in_specs=[
                pl.BlockSpec((tile, INPUT_SIZE), lambda i: (i, 0)),      # x tile
                pl.BlockSpec((_W_TOTAL_ROWS, LANE), lambda i: (0, 0)),   # weights (resident)
                pl.BlockSpec((8, LANE), lambda i: (0, 0)),               # biases (resident)
            ],
            out_specs=[
                pl.BlockSpec((tile, INPUT_SIZE), lambda i: (i, 0)),      # backcast
                pl.BlockSpec((tile, FORECAST_SIZE), lambda i: (i, 0)),   # forecast
            ],
        ),
        compiler_params=pltpu.CompilerParams(
            dimension_semantics=("parallel",)),
    )(x, w_packed, b_packed)

    if pad:
        backcast = backcast[:bsz]
        forecast = forecast[:bsz]
    return backcast, forecast


def init_params(key):
    """Deterministic init; weights stored (in, out), biases (1, out)."""
    ks = jax.random.split(key, 8)

    def lin(kw, kb, fan_in, fan_out):
        bound = 1.0 / jnp.sqrt(fan_in)
        w = jax.random.uniform(kw, (fan_in, fan_out), jnp.float32, -bound, bound)
        b = jax.random.uniform(kb, (1, fan_out), jnp.float32, -bound, bound)
        return w, b

    w0, b0 = lin(ks[0], ks[1], INPUT_SIZE, H)
    w1, b1 = lin(ks[2], ks[3], H, H)
    w2, b2 = lin(ks[4], ks[5], H, H)
    w3, b3 = lin(ks[6], ks[7], H, N_THETA)
    return dict(w0=w0, b0=b0, w1=w1, b1=b1, w2=w2, b2=b2, w3=w3, b3=b3)


def reference(x, p):
    """Pure-JAX reference of the same forward pass."""
    h = x @ p["w0"] + p["b0"]
    h = jnp.maximum(h @ p["w1"] + p["b1"], 0.0)
    h = jnp.maximum(h @ p["w2"] + p["b2"], 0.0)
    theta = h @ p["w3"] + p["b3"]
    return theta[:, :INPUT_SIZE], theta[:, INPUT_SIZE:]


if __name__ == "__main__":
    key = jax.random.PRNGKey(0)
    k_x, k_p = jax.random.split(key)

    B = 256                                    # -> 2 grid steps of 128 rows
    x = jax.random.normal(k_x, (B, INPUT_SIZE), jnp.float32)
    params = init_params(k_p)
    w_packed, b_packed = pack_params(params)

    backcast, forecast = nbeats_block(x, w_packed, b_packed)
    backcast, forecast = jax.block_until_ready((backcast, forecast))

    rb, rf = reference(x, params)
    assert backcast.shape == (B, INPUT_SIZE) and forecast.shape == (B, FORECAST_SIZE)
    assert jnp.allclose(backcast, rb, atol=1e-4, rtol=1e-4), "backcast mismatch"
    assert jnp.allclose(forecast, rf, atol=1e-4, rtol=1e-4), "forecast mismatch"

    print("KERNEL_OK")
</pallas_src>

<mosaic_0001>
module attributes {stable_mosaic.version = 11 : i64} {
  func.func @nbeats_block_kernel(%arg0: i32, %arg1: memref<128x16xf32, #tpu.memory_space<vmem>>, %arg2: memref<144x128xf32, #tpu.memory_space<vmem>>, %arg3: memref<8x128xf32, #tpu.memory_space<vmem>>, %arg4: memref<128x16xf32, #tpu.memory_space<vmem>>, %arg5: memref<128x12xf32, #tpu.memory_space<vmem>>) attributes {dimension_semantics = [#tpu.dimension_semantics<parallel>], iteration_bounds = array<i64: 2>, scalar_prefetch = 0 : i64, scratch_operands = 0 : i64, tpu.core_type = #tpu.core_type<tc>, window_params = [{transform_indices = @transform_0, window_bounds = array<i64: 128, 16>}, {pipeline_mode = #tpu.pipeline_mode<synchronous>, transform_indices = @transform_1, window_bounds = array<i64: 144, 128>}, {pipeline_mode = #tpu.pipeline_mode<synchronous>, transform_indices = @transform_2, window_bounds = array<i64: 8, 128>}, {transform_indices = @transform_3, window_bounds = array<i64: 128, 16>}, {transform_indices = @transform_4, window_bounds = array<i64: 128, 12>}]} {
    %c0 = arith.constant 0 : index
    %c0_0 = arith.constant 0 : index
    %0 = vector.load %arg1[%c0, %c0_0] : memref<128x16xf32, #tpu.memory_space<vmem>>, vector<128x16xf32>
    %c0_1 = arith.constant 0 : index
    %c0_2 = arith.constant 0 : index
    %1 = vector.load %arg2[%c0_1, %c0_2] : memref<144x128xf32, #tpu.memory_space<vmem>>, vector<16x128xf32>
    %c16 = arith.constant 16 : index
    %c0_3 = arith.constant 0 : index
    %2 = vector.load %arg2[%c16, %c0_3] : memref<144x128xf32, #tpu.memory_space<vmem>>, vector<32x128xf32>
    %c48 = arith.constant 48 : index
    %c0_4 = arith.constant 0 : index
    %3 = vector.load %arg2[%c48, %c0_4] : memref<144x128xf32, #tpu.memory_space<vmem>>, vector<32x128xf32>
    %c80 = arith.constant 80 : index
    %c0_5 = arith.constant 0 : index
    %4 = vector.load %arg2[%c80, %c0_5] : memref<144x128xf32, #tpu.memory_space<vmem>>, vector<32x128xf32>
    %c112 = arith.constant 112 : index
    %c0_6 = arith.constant 0 : index
    %5 = vector.load %arg2[%c112, %c0_6] : memref<144x128xf32, #tpu.memory_space<vmem>>, vector<32x128xf32>
    %c0_7 = arith.constant 0 : index
    %c0_8 = arith.constant 0 : index
    %6 = vector.load %arg3[%c0_7, %c0_8] : memref<8x128xf32, #tpu.memory_space<vmem>>, vector<8x128xf32>
    %7 = vector.extract_strided_slice %6 {offsets = [0, 0], sizes = [1, 128], strides = [1, 1]} : vector<8x128xf32> to vector<1x128xf32>
    %8 = vector.extract_strided_slice %6 {offsets = [1, 0], sizes = [1, 128], strides = [1, 1]} : vector<8x128xf32> to vector<1x128xf32>
    %9 = vector.extract_strided_slice %6 {offsets = [2, 0], sizes = [1, 128], strides = [1, 1]} : vector<8x128xf32> to vector<1x128xf32>
    %10 = vector.extract_strided_slice %6 {offsets = [3, 0], sizes = [1, 128], strides = [1, 1]} : vector<8x128xf32> to vector<1x128xf32>
    %11 = vector.extract_strided_slice %6 {offsets = [4, 0], sizes = [1, 128], strides = [1, 1]} : vector<8x128xf32> to vector<1x128xf32>
    %cst = arith.constant dense<0.000000e+00> : vector<128x128xf32>
    %12 = tpu.matmul %0, %1, %cst {dimension_numbers = #tpu.dot_dimension_numbers<[1], [0], [0], [1], [0, 0, 1, 1], [], []>} : vector<128x16xf32>, vector<16x128xf32>, vector<128x128xf32> -> vector<128x128xf32>
    %13 = vector.broadcast %7 : vector<1x128xf32> to vector<128x128xf32>
    %14 = arith.addf %12, %13 : vector<128x128xf32>
    %15 = vector.extract_strided_slice %14 {offsets = [0, 0], sizes = [128, 32], strides = [1, 1]} : vector<128x128xf32> to vector<128x32xf32>
    %cst_9 = arith.constant dense<0.000000e+00> : vector<128x128xf32>
    %16 = tpu.matmul %15, %2, %cst_9 {dimension_numbers = #tpu.dot_dimension_numbers<[1], [0], [0], [1], [0, 0, 1, 1], [], []>} : vector<128x32xf32>, vector<32x128xf32>, vector<128x128xf32> -> vector<128x128xf32>
    %17 = vector.broadcast %8 : vector<1x128xf32> to vector<128x128xf32>
    %18 = arith.addf %16, %17 : vector<128x128xf32>
    %cst_10 = arith.constant 0.000000e+00 : f32
    %19 = vector.broadcast %cst_10 : f32 to vector<128x128xf32>
    %20 = arith.maximumf %18, %19 : vector<128x128xf32>
    %21 = vector.extract_strided_slice %20 {offsets = [0, 0], sizes = [128, 32], strides = [1, 1]} : vector<128x128xf32> to vector<128x32xf32>
    %cst_11 = arith.constant dense<0.000000e+00> : vector<128x128xf32>
    %22 = tpu.matmul %21, %3, %cst_11 {dimension_numbers = #tpu.dot_dimension_numbers<[1], [0], [0], [1], [0, 0, 1, 1], [], []>} : vector<128x32xf32>, vector<32x128xf32>, vector<128x128xf32> -> vector<128x128xf32>
    %23 = vector.broadcast %9 : vector<1x128xf32> to vector<128x128xf32>
    %24 = arith.addf %22, %23 : vector<128x128xf32>
    %cst_12 = arith.constant 0.000000e+00 : f32
    %25 = vector.broadcast %cst_12 : f32 to vector<128x128xf32>
    %26 = arith.maximumf %24, %25 : vector<128x128xf32>
    %27 = vector.extract_strided_slice %26 {offsets = [0, 0], sizes = [128, 32], strides = [1, 1]} : vector<128x128xf32> to vector<128x32xf32>
    %cst_13 = arith.constant dense<0.000000e+00> : vector<128x128xf32>
    %28 = tpu.matmul %27, %4, %cst_13 {dimension_numbers = #tpu.dot_dimension_numbers<[1], [0], [0], [1], [0, 0, 1, 1], [], []>} : vector<128x32xf32>, vector<32x128xf32>, vector<128x128xf32> -> vector<128x128xf32>
    %29 = vector.broadcast %10 : vector<1x128xf32> to vector<128x128xf32>
    %30 = arith.addf %28, %29 : vector<128x128xf32>
    %cst_14 = arith.constant dense<0.000000e+00> : vector<128x128xf32>
    %31 = tpu.matmul %27, %5, %cst_14 {dimension_numbers = #tpu.dot_dimension_numbers<[1], [0], [0], [1], [0, 0, 1, 1], [], []>} : vector<128x32xf32>, vector<32x128xf32>, vector<128x128xf32> -> vector<128x128xf32>
    %32 = vector.broadcast %11 : vector<1x128xf32> to vector<128x128xf32>
    %33 = arith.addf %31, %32 : vector<128x128xf32>
    %34 = vector.extract_strided_slice %30 {offsets = [0, 0], sizes = [128, 16], strides = [1, 1]} : vector<128x128xf32> to vector<128x16xf32>
    %c0_15 = arith.constant 0 : index
    %c0_16 = arith.constant 0 : index
    %35 = vector.load %arg4[%c0_15, %c0_16] : memref<128x16xf32, #tpu.memory_space<vmem>>, vector<128x16xf32>
    tpu.vector_store %arg4[%c0_15, %c0_16], %34 {strides = array<i32>} : memref<128x16xf32, #tpu.memory_space<vmem>>, vector<128x16xf32>,
    %36 = vector.extract_strided_slice %33 {offsets = [0, 0], sizes = [128, 12], strides = [1, 1]} : vector<128x128xf32> to vector<128x12xf32>
    %c0_17 = arith.constant 0 : index
    %c0_18 = arith.constant 0 : index
    %37 = vector.load %arg5[%c0_17, %c0_18] : memref<128x12xf32, #tpu.memory_space<vmem>>, vector<128x12xf32>
    tpu.vector_store %arg5[%c0_17, %c0_18], %36 {strides = array<i32>} : memref<128x12xf32, #tpu.memory_space<vmem>>, vector<128x12xf32>,
    return
  }
  func.func @transform_0(%arg0: i32) -> (i32, i32) {
    %c0_i32 = arith.constant 0 : i32
    %c0_i32_0 = arith.constant 0 : i32
    return %arg0, %c0_i32 : i32, i32
  }
  func.func @transform_1(%arg0: i32) -> (i32, i32) {
    %c0_i32 = arith.constant 0 : i32
    %c0_i32_0 = arith.constant 0 : i32
    %c0_i32_1 = arith.constant 0 : i32
    return %c0_i32, %c0_i32_0 : i32, i32
  }
  func.func @transform_2(%arg0: i32) -> (i32, i32) {
    %c0_i32 = arith.constant 0 : i32
    %c0_i32_0 = arith.constant 0 : i32
    %c0_i32_1 = arith.constant 0 : i32
    return %c0_i32, %c0_i32_0 : i32, i32
  }
  func.func @transform_3(%arg0: i32) -> (i32, i32) {
    %c0_i32 = arith.constant 0 : i32
    %c0_i32_0 = arith.constant 0 : i32
    return %arg0, %c0_i32 : i32, i32
  }
  func.func @transform_4(%arg0: i32) -> (i32, i32) {
    %c0_i32 = arith.constant 0 : i32
    %c0_i32_0 = arith.constant 0 : i32
    return %arg0, %c0_i32 : i32, i32
  }
}

</mosaic_0001>

<llo_original>
// kernel: tpu_custom_call.1
$region0: #{tpu_custom_call.1}
  #allocation0 [shape = 'u32[]', space=smem, size = 0x4, offset = 0x4, fixed_abs, tag = 'smem constant byte address 0x4 - core index']
  #allocation1 [shape = 'u32[144,128]{1,0:T(1,128)}', space=vmem, size = 0x12000, scoped, tag = 'internal scratch']
  %s0 = inlined_call_operand.vmem [shape: f32[256,16], index: 0, kind: input, shape index: {}]
  %s1 = inlined_call_operand.vmem [shape: f32[144,128], index: 1, kind: input, shape index: {}]
  %s2 = inlined_call_operand.vmem [shape: f32[8,128], index: 2, kind: input, shape index: {}]
  %s3 = inlined_call_operand.vmem [shape: f32[256,16], index: 3, kind: output, shape index: {0}]
  %s4 = inlined_call_operand.vmem [shape: f32[256,12], index: 4, kind: output, shape index: {1}]
  %5 = xla_tuple %s3, %s4
  %s6 = sld [smem:[#allocation0]]
  $region53: #{tpu_custom_call.1} parent=0
    _
  %s8 = ssub.s32 1, %s6
  %s9 = scalar_select 0, %s8, %s6
  loop: start=0, step=1, limit=4
  $region2: #{tpu_custom_call.1} parent=0 // loop_pre_header
    _
  $region3: #{tpu_custom_call.1} parent=0 // loop_header
    %s11 = sphi 0, %s15
    %p12 = scmp.ge.s32.totalorder %s11, 4
    %s21 = sphi 0, %s23
    %s24 = sphi 0, %s21
    %s25 = sphi 0, %s24
    %s41 = sphi 0, %s25
    %s45 = sphi 0, %s45
    %s47 = sphi 0, %s45
    %s48 = sphi 0, %s47
    %s62 = sphi 0, %s48
    %s66 = sphi 0, %s66
    %s68 = sphi 0, %s66
    %s69 = sphi 0, %s68
    %s83 = sphi 0, %s69
    %s89 = sphi 0, %s91
    %s92 = sphi 0, %s89
    %s93 = sphi 0, %s92
    %s109 = sphi 0, %s93
    %s115 = sphi 0, %s117
    %s118 = sphi 0, %s115
    %s119 = sphi 0, %s118
    %s135 = sphi 0, %s119
  $region4: #{tpu_custom_call.1} parent=0 // loop_header_branch
    %14 = sbr.rel (%p12) target = $region8
  $region5: #{tpu_custom_call.1} parent=0 // loop_body
    %s16 = ssub.s32 %s11, 1
    %s17 = ssub.s32 %s11, 2
    %s18 = sadd.s32 %s11, 1
    %s19 = ssub.s32 %s11, %s18
    %p20 = scmp.eq.s32.totalorder %s19, 0
    %s22 = sadd.s32 %s21, 1
    %s23 = scalar_select %p20, %s21, %s22
    %p26 = pneg %p20
    %p27 = scmp.eq.s32.totalorder %s11, 1
    %p28 = por %p26, %p27
    %p29 = scmp.ne.s32.totalorder %s21, %s24
    %p30 = scmp.eq.s32.totalorder %s11, 0
    %p31 = por %p29, %p30
    %p32 = scmp.ne.s32.totalorder %s21, %s24
    %p33 = scmp.eq.s32.totalorder %s16, 1
    %p34 = por %p32, %p33
    %p35 = scmp.ne.s32.totalorder %s24, %s25
    %p36 = scmp.eq.s32.totalorder %s16, 0
    %p37 = por %p35, %p36
    %p38 = scmp.ne.s32.totalorder %s24, %s25
    %p39 = scmp.eq.s32.totalorder %s17, 1
    %p40 = por %p38, %p39
    %p42 = scmp.ne.s32.totalorder %s25, %s41
    %p43 = scmp.eq.s32.totalorder %s17, 0
    %p44 = por %p42, %p43
    %s46 = sadd.s32 %s45, 1
    %p49 = scmp.eq.s32.totalorder %s11, 1
    %p50 = scmp.ne.s32.totalorder %s45, %s47
    %p51 = scmp.eq.s32.totalorder %s11, 0
    %p52 = por %p50, %p51
    %p53 = scmp.ne.s32.totalorder %s45, %s47
    %p54 = scmp.eq.s32.totalorder %s16, 1
    %p55 = por %p53, %p54
    %p56 = scmp.ne.s32.totalorder %s47, %s48
    %p57 = scmp.eq.s32.totalorder %s16, 0
    %p58 = por %p56, %p57
    %p59 = scmp.ne.s32.totalorder %s47, %s48
    %p60 = scmp.eq.s32.totalorder %s17, 1
    %p61 = por %p59, %p60
    %p63 = scmp.ne.s32.totalorder %s48, %s62
    %p64 = scmp.eq.s32.totalorder %s17, 0
    %p65 = por %p63, %p64
    %s67 = sadd.s32 %s66, 1
    %p70 = scmp.eq.s32.totalorder %s11, 1
    %p71 = scmp.ne.s32.totalorder %s66, %s68
    %p72 = scmp.eq.s32.totalorder %s11, 0
    %p73 = por %p71, %p72
    %p74 = scmp.ne.s32.totalorder %s66, %s68
    %p75 = scmp.eq.s32.totalorder %s16, 1
    %p76 = por %p74, %p75
    %p77 = scmp.ne.s32.totalorder %s68, %s69
    %p78 = scmp.eq.s32.totalorder %s16, 0
    %p79 = por %p77, %p78
    %p80 = scmp.ne.s32.totalorder %s68, %s69
    %p81 = scmp.eq.s32.totalorder %s17, 1
    %p82 = por %p80, %p81
    %p84 = scmp.ne.s32.totalorder %s69, %s83
    %p85 = scmp.eq.s32.totalorder %s17, 0
    %p86 = por %p84, %p85
    %s87 = ssub.s32 %s11, %s18
    %p88 = scmp.eq.s32.totalorder %s87, 0
    %s90 = sadd.s32 %s89, 1
    %s91 = scalar_select %p88, %s89, %s90
    %p94 = pneg %p88
    %p95 = scmp.eq.s32.totalorder %s11, 1
    %p96 = por %p94, %p95
    %p97 = scmp.ne.s32.totalorder %s89, %s92
    %p98 = scmp.eq.s32.totalorder %s11, 0
    %p99 = por %p97, %p98
    %p100 = scmp.ne.s32.totalorder %s89, %s92
    %p101 = scmp.eq.s32.totalorder %s16, 1
    %p102 = por %p100, %p101
    %p103 = scmp.ne.s32.totalorder %s92, %s93
    %p104 = scmp.eq.s32.totalorder %s16, 0
    %p105 = por %p103, %p104
    %p106 = scmp.ne.s32.totalorder %s92, %s93
    %p107 = scmp.eq.s32.totalorder %s17, 1
    %p108 = por %p106, %p107
    %p110 = scmp.ne.s32.totalorder %s93, %s109
    %p111 = scmp.eq.s32.totalorder %s17, 0
    %p112 = por %p110, %p111
    %s113 = ssub.s32 %s11, %s18
    %p114 = scmp.eq.s32.totalorder %s113, 0
    %s116 = sadd.s32 %s115, 1
    %s117 = scalar_select %p114, %s115, %s116
    %p120 = pneg %p114
    %p121 = scmp.eq.s32.totalorder %s11, 1
    %p122 = por %p120, %p121
    %p123 = scmp.ne.s32.totalorder %s115, %s118
    %p124 = scmp.eq.s32.totalorder %s11, 0
    %p125 = por %p123, %p124
    %p126 = scmp.ne.s32.totalorder %s115, %s118
    %p127 = scmp.eq.s32.totalorder %s16, 1
    %p128 = por %p126, %p127
    %p129 = scmp.ne.s32.totalorder %s118, %s119
    %p130 = scmp.eq.s32.totalorder %s16, 0
    %p131 = por %p129, %p130
    %p132 = scmp.ne.s32.totalorder %s118, %s119
    %p133 = scmp.eq.s32.totalorder %s17, 1
    %p134 = por %p132, %p133
    %p136 = scmp.ne.s32.totalorder %s119, %s135
    %p137 = scmp.eq.s32.totalorder %s17, 0
    %p138 = por %p136, %p137
    %p139 = scmp.le.s32.totalorder 1, %s11
    %p140 = scmp.lt.s32.totalorder %s11, 3
    %p141 = pnand %p139, %p140
    %p142 = pneg %p141
    // Predicated region
    $region9: #{tpu_custom_call.1} parent=5 // pred_check
      _
    $region10: #{tpu_custom_call.1} parent=5 // pred_check_branch
      %144 = sbr.rel (%p141) target = $region12
    $region11: #{tpu_custom_call.1} parent=5 // pred_region
      %s145 = ssub.s32 %s11, 1
      // Predicated region
      $region13: #{tpu_custom_call.1} parent=11 // pred_check
        %p146 = pneg %p58
      $region14: #{tpu_custom_call.1} parent=11 // pred_check_branch
        %148 = sbr.rel (%p146) target = $region16
      $region15: #{tpu_custom_call.1} parent=11 // pred_region
        _
      $region16: #{tpu_custom_call.1} parent=11 // pred_fallthru
        _
      // Predicated region
      $region17: #{tpu_custom_call.1} parent=11 // pred_check
        %p149 = pneg %p79
      $region18: #{tpu_custom_call.1} parent=11 // pred_check_branch
        %151 = sbr.rel (%p149) target = $region20
      $region19: #{tpu_custom_call.1} parent=11 // pred_region
        _
      $region20: #{tpu_custom_call.1} parent=11 // pred_fallthru
        _
    $region12: #{tpu_custom_call.1} parent=5 // pred_fallthru
      _
    %p152 = scmp.lt.s32.totalorder %s11, 2
    // Predicated region
    $region21: #{tpu_custom_call.1} parent=5 // pred_check
      %p153 = pneg %p152
    $region22: #{tpu_custom_call.1} parent=5 // pred_check_branch
      %155 = sbr.rel (%p153) target = $region24
    $region23: #{tpu_custom_call.1} parent=5 // pred_region
      // Predicated region
      $region25: #{tpu_custom_call.1} parent=23 // pred_check
        %p156 = pneg %p31
      $region26: #{tpu_custom_call.1} parent=23 // pred_check_branch
        %158 = sbr.rel (%p156) target = $region28
      $region27: #{tpu_custom_call.1} parent=23 // pred_region
        %s159 = smul.u32 16, %s11
        %p160 = scmp.lt.s32.totalorder %s159, 31
        %s161 = scalar_select %p160, %s159, 31
        %s162 = smul.addr %s161, 8
        %s163 = scalar_lea.vmem %s0, %s162
        %s164 = smul.u32 16, %s11
      $region28: #{tpu_custom_call.1} parent=23 // pred_fallthru
        _
    $region24: #{tpu_custom_call.1} parent=5 // pred_fallthru
      _
    %p165 = scmp.le.s32.totalorder 1, %s11
    %p166 = scmp.lt.s32.totalorder %s11, 3
    %p167 = pnand %p165, %p166
    %p168 = pneg %p167
    // Predicated region
    $region29: #{tpu_custom_call.1} parent=5 // pred_check
      _
    $region30: #{tpu_custom_call.1} parent=5 // pred_check_branch
      %170 = sbr.rel (%p167) target = $region32
    $region31: #{tpu_custom_call.1} parent=5 // pred_region
      %s171 = ssub.s32 %s11, 1
      %s172 = smul.u32 16, %s16
      %p173 = scmp.lt.s32.totalorder %s172, 31
      %s174 = scalar_select %p173, %s172, 31
      %s175 = smul.addr %s174, 8
      %s176 = scalar_lea.vmem %s0, %s175
      %p177 = pneg %p37
      %p178 = pneg %p34
      %p179 = pneg %p58
      %p180 = pneg %p55
      %p181 = pneg %p79
      %p182 = pneg %p76
      %p183 = pneg %p105
      %p184 = pneg %p102
      %s185 = smul.u32 16, %s16
      %p186 = scmp.lt.s32.totalorder %s185, 31
      %s187 = scalar_select %p186, %s185, 31
      %s188 = smul.addr %s187, 8
      %s189 = scalar_lea.vmem %s3, %s188
      %p190 = pneg %p131
      %p191 = pneg %p128
      %s192 = smul.u32 16, %s16
      %p193 = scmp.lt.s32.totalorder %s192, 31
      %s194 = scalar_select %p193, %s192, 31
      %s195 = smul.addr %s194, 8
      %s196 = scalar_lea.vmem %s4, %s195
      %s197 = smul.u32 16, %s16
      %p198 = scmp.lt.s32.totalorder %s197, 31
      %s199 = scalar_select %p198, %s197, 31
      %s200 = smul.addr %s199, 8
      %s201 = scalar_lea.vmem %s0, %s200
      %s202 = smul.u32 16, %s16
      %s203 = smul.u32 16, %s16
      %p204 = scmp.lt.s32.totalorder %s203, 31
      %s205 = scalar_select %p204, %s203, 31
      %s206 = smul.addr %s205, 8
      %s207 = scalar_lea.vmem %s3, %s206
      %s208 = smul.u32 16, %s16
      %s209 = smul.u32 16, %s16
      %p210 = scmp.lt.s32.totalorder %s209, 31
      %s211 = scalar_select %p210, %s209, 31
      %s212 = smul.addr %s211, 8
      %s213 = scalar_lea.vmem %s4, %s212
      %s214 = smul.u32 16, %s16
      %v215 = vld [vmem:[%s201] sm:$0xff]
      %v216 = vld [vmem:[%s201 + $0x8] sm:$0xff]
      %v217 = vld [vmem:[%s201 + $0x10] sm:$0xff]
      %v218 = vld [vmem:[%s201 + $0x18] sm:$0xff]
      %v219 = vld [vmem:[%s201 + $0x20] sm:$0xff]
      %v220 = vld [vmem:[%s201 + $0x28] sm:$0xff]
      %v221 = vld [vmem:[%s201 + $0x30] sm:$0xff]
      %v222 = vld [vmem:[%s201 + $0x38] sm:$0xff]
      %v223 = vld [vmem:[%s201 + $0x40] sm:$0xff]
      %v224 = vld [vmem:[%s201 + $0x48] sm:$0xff]
      %v225 = vld [vmem:[%s201 + $0x50] sm:$0xff]
      %v226 = vld [vmem:[%s201 + $0x58] sm:$0xff]
      %v227 = vld [vmem:[%s201 + $0x60] sm:$0xff]
      %v228 = vld [vmem:[%s201 + $0x68] sm:$0xff]
      %v229 = vld [vmem:[%s201 + $0x70] sm:$0xff]
      %v230 = vld [vmem:[%s201 + $0x78] sm:$0xff]
      %v231 = vld [vmem:[%s1] sm:$0xff]
      %v232 = vld [vmem:[%s1 + $0x8] sm:$0xff]
      %v233 = vld [vmem:[%s1 + $0x10] sm:$0xff]
      %v234 = vld [vmem:[%s1 + $0x18] sm:$0xff]
      %v235 = vld [vmem:[%s1 + $0x20] sm:$0xff]
      %v236 = vld [vmem:[%s1 + $0x28] sm:$0xff]
      %v237 = vld [vmem:[%s1 + $0x30] sm:$0xff]
      %v238 = vld [vmem:[%s1 + $0x38] sm:$0xff]
      %v239 = vld [vmem:[%s1 + $0x40] sm:$0xff]
      %v240 = vld [vmem:[%s1 + $0x48] sm:$0xff]
      %v241 = vld [vmem:[%s1 + $0x50] sm:$0xff]
      %v242 = vld [vmem:[%s1 + $0x58] sm:$0xff]
      %v243 = vld [vmem:[%s1 + $0x60] sm:$0xff]
      %v244 = vld [vmem:[%s1 + $0x68] sm:$0xff]
      %v245 = vld [vmem:[%s1 + $0x70] sm:$0xff]
      %v246 = vld [vmem:[%s1 + $0x78] sm:$0xff]
      %v247 = vld [vmem:[%s1 + $0x80] sm:$0xff]
      %v248 = vld [vmem:[%s1 + $0x88] sm:$0xff]
      %v249 = vld [vmem:[%s2] sm:$0xff]
      %v250 = vlaneseq
      %v251 = vshrl.u32 %v250, 7
      %v252 = vsub.s32 0, %v251
      %v253 = vrot.slane %v249, %v252
      %vm254 = vcmask 130048
      %v256 = vsel %vm254, %v215, 0
      %v259 = vsel %vm254, %v216, 0
      %v262 = vsel %vm254, %v217, 0
      %v265 = vsel %vm254, %v218, 0
      %v268 = vsel %vm254, %v219, 0
      %v271 = vsel %vm254, %v220, 0
      %v274 = vsel %vm254, %v221, 0
      %v277 = vsel %vm254, %v222, 0
      %v280 = vsel %vm254, %v223, 0
      %v283 = vsel %vm254, %v224, 0
      %v286 = vsel %vm254, %v225, 0
      %v289 = vsel %vm254, %v226, 0
      %v292 = vsel %vm254, %v227, 0
      %v295 = vsel %vm254, %v228, 0
      %v298 = vsel %vm254, %v229, 0
      %v301 = vsel %vm254, %v230, 0
      %303 = vmatprep.subr.mxu0 0.0
      %304 = vmatpush1.msra.mxu0 0.0
      %305 = vmatprep.subr.mxu0 0.0
      %306 = vmatpush1.msra.mxu0 0.0
      %307 = vmatprep.subr.mxu0 0.0
      %308 = vmatpush1.msra.mxu0 0.0
      %309 = vmatprep.subr.mxu0 0.0
      %310 = vmatpush1.msra.mxu0 0.0
      %311 = vmatprep.subr.mxu0 0.0
      %312 = vmatpush1.msra.mxu0 0.0
      %313 = vmatprep.subr.mxu0 0.0
      %314 = vmatpush1.msra.mxu0 0.0
      %315 = vmatprep.subr.mxu0 0.0
      %316 = vmatpush1.msra.mxu0 0.0
      %317 = vmatprep.subr.mxu0 0.0
      %318 = vmatpush1.msra.mxu0 0.0
      %319 = vmatprep.subr.mxu0 0.0
      %320 = vmatpush1.msra.mxu0 0.0
      %321 = vmatprep.subr.mxu0 0.0
      %322 = vmatpush1.msra.mxu0 0.0
      %323 = vmatprep.subr.mxu0 0.0
      %324 = vmatpush1.msra.mxu0 0.0
      %325 = vmatprep.subr.mxu0 0.0
      %326 = vmatpush1.msra.mxu0 0.0
      %327 = vmatprep.subr.mxu0 0.0
      %328 = vmatpush1.msra.mxu0 0.0
      %329 = vmatprep.subr.mxu0 0.0
      %330 = vmatpush1.msra.mxu0 0.0
      %331 = vmatprep.subr.mxu0 0.0
      %332 = vmatpush1.msra.mxu0 %v232
      %333 = vmatprep.subr.mxu0 0.0
      %334 = vmatpush1.msra.mxu0 %v231
      %335 = vmatprep.subr.mxu0 0.0
      %336 = vmatpush2.msra.mxu0 0.0
      %337 = vmatprep.subr.mxu0 0.0
      %338 = vmatpush2.msra.mxu0 0.0
      %339 = vmatprep.subr.mxu0 0.0
      %340 = vmatpush2.msra.mxu0 0.0
      %341 = vmatprep.subr.mxu0 0.0
      %342 = vmatpush2.msra.mxu0 0.0
      %343 = vmatprep.subr.mxu0 0.0
      %344 = vmatpush2.msra.mxu0 0.0
      %345 = vmatprep.subr.mxu0 0.0
      %346 = vmatpush2.msra.mxu0 0.0
      %347 = vmatprep.subr.mxu0 0.0
      %348 = vmatpush2.msra.mxu0 0.0
      %349 = vmatprep.subr.mxu0 0.0
      %350 = vmatpush2.msra.mxu0 0.0
      %351 = vmatprep.subr.mxu0 0.0
      %352 = vmatpush2.msra.mxu0 0.0
      %353 = vmatprep.subr.mxu0 0.0
      %354 = vmatpush2.msra.mxu0 0.0
      %355 = vmatprep.subr.mxu0 0.0
      %356 = vmatpush2.msra.mxu0 0.0
      %357 = vmatprep.subr.mxu0 0.0
      %358 = vmatpush2.msra.mxu0 0.0
      %359 = vmatprep.subr.mxu0 0.0
      %360 = vmatpush2.msra.mxu0 0.0
      %361 = vmatprep.subr.mxu0 0.0
      %362 = vmatpush2.msra.mxu0 0.0
      %363 = vmatprep.subr.mxu0 0.0
      %364 = vmatpush2.msra.mxu0 0.0
      %365 = vmatprep.subr.mxu0 0.0
      %366 = vmatpush2.msra.mxu0 0.0
      %367 = vmatprep.mubr.f32.mxu0 0.0
      %368 = vmatmul.mubr.f32.gmra.mxu0 %v256
      %v369 = vpop.f32.mrf.mxu0
      %v370 = vadd.f32 %v253, %v369
      %v371 = vpop.f32.mrf.mxu0
      %372 = vmatprep.mubr.f32.mxu0 0.0
      %373 = vmatmul.mubr.f32.gmra.mxu0 %v259
      %v374 = vpop.f32.mrf.mxu0
      %v375 = vadd.f32 %v253, %v374
      %v376 = vpop.f32.mrf.mxu0
      %377 = vmatprep.mubr.f32.mxu0 0.0
      %378 = vmatmul.mubr.f32.gmra.mxu0 %v262
      %v379 = vpop.f32.mrf.mxu0
      %v380 = vadd.f32 %v253, %v379
      %v381 = vpop.f32.mrf.mxu0
      %382 = vmatprep.mubr.f32.mxu0 0.0
      %383 = vmatmul.mubr.f32.gmra.mxu0 %v265
      %v384 = vpop.f32.mrf.mxu0
      %v385 = vadd.f32 %v253, %v384
      %v386 = vpop.f32.mrf.mxu0
      %387 = vmatprep.mubr.f32.mxu0 0.0
      %388 = vmatmul.mubr.f32.gmra.mxu0 %v268
      %v389 = vpop.f32.mrf.mxu0
      %v390 = vadd.f32 %v253, %v389
      %v391 = vpop.f32.mrf.mxu0
      %392 = vmatprep.mubr.f32.mxu0 0.0
      %393 = vmatmul.mubr.f32.gmra.mxu0 %v271
      %v394 = vpop.f32.mrf.mxu0
      %v395 = vadd.f32 %v253, %v394
      %v396 = vpop.f32.mrf.mxu0
      %397 = vmatprep.mubr.f32.mxu0 0.0
      %398 = vmatmul.mubr.f32.gmra.mxu0 %v274
      %v399 = vpop.f32.mrf.mxu0
      %v400 = vadd.f32 %v253, %v399
      %v401 = vpop.f32.mrf.mxu0
      %402 = vmatprep.mubr.f32.mxu0 0.0
      %403 = vmatmul.mubr.f32.gmra.mxu0 %v277
      %v404 = vpop.f32.mrf.mxu0
      %v405 = vadd.f32 %v253, %v404
      %v406 = vpop.f32.mrf.mxu0
      %407 = vmatprep.mubr.f32.mxu0 0.0
      %408 = vmatmul.mubr.f32.gmra.mxu0 %v280
      %v409 = vpop.f32.mrf.mxu0
      %v410 = vadd.f32 %v253, %v409
      %v411 = vpop.f32.mrf.mxu0
      %412 = vmatprep.mubr.f32.mxu0 0.0
      %413 = vmatmul.mubr.f32.gmra.mxu0 %v283
      %v414 = vpop.f32.mrf.mxu0
      %v415 = vadd.f32 %v253, %v414
      %v416 = vpop.f32.mrf.mxu0
      %417 = vmatprep.mubr.f32.mxu0 0.0
      %418 = vmatmul.mubr.f32.gmra.mxu0 %v286
      %v419 = vpop.f32.mrf.mxu0
      %v420 = vadd.f32 %v253, %v419
      %v421 = vpop.f32.mrf.mxu0
      %422 = vmatprep.mubr.f32.mxu0 0.0
      %423 = vmatmul.mubr.f32.gmra.mxu0 %v289
      %v424 = vpop.f32.mrf.mxu0
      %v425 = vadd.f32 %v253, %v424
      %v426 = vpop.f32.mrf.mxu0
      %427 = vmatprep.mubr.f32.mxu0 0.0
      %428 = vmatmul.mubr.f32.gmra.mxu0 %v292
      %v429 = vpop.f32.mrf.mxu0
      %v430 = vadd.f32 %v253, %v429
      %v431 = vpop.f32.mrf.mxu0
      %432 = vmatprep.mubr.f32.mxu0 0.0
      %433 = vmatmul.mubr.f32.gmra.mxu0 %v295
      %v434 = vpop.f32.mrf.mxu0
      %v435 = vadd.f32 %v253, %v434
      %v436 = vpop.f32.mrf.mxu0
      %437 = vmatprep.mubr.f32.mxu0 0.0
      %438 = vmatmul.mubr.f32.gmra.mxu0 %v298
      %v439 = vpop.f32.mrf.mxu0
      %v440 = vadd.f32 %v253, %v439
      %v441 = vpop.f32.mrf.mxu0
      %442 = vmatprep.mubr.f32.mxu0 0.0
      %443 = vmatmul.mubr.f32.gmra.mxu0 %v301
      %v444 = vpop.f32.mrf.mxu0
      %v445 = vadd.f32 %v253, %v444
      %v446 = vpop.f32.mrf.mxu0
      %447 = vdwg.mxu0
      %v448 = vlaneseq
      %v449 = vshrl.u32 %v448, 7
      %v450 = vsub.s32 1, %v449
      %v451 = vrot.slane %v249, %v450
      %vm452 = vcmask 261120
      %v454 = vsel %vm452, %v370, 0
      %v457 = vsel %vm452, %v375, 0
      %v460 = vsel %vm452, %v380, 0
      %v463 = vsel %vm452, %v385, 0
      %v466 = vsel %vm452, %v390, 0
      %v469 = vsel %vm452, %v395, 0
      %v472 = vsel %vm452, %v400, 0
      %v475 = vsel %vm452, %v405, 0
      %v478 = vsel %vm452, %v410, 0
      %v481 = vsel %vm452, %v415, 0
      %v484 = vsel %vm452, %v420, 0
      %v487 = vsel %vm452, %v425, 0
      %v490 = vsel %vm452, %v430, 0
      %v493 = vsel %vm452, %v435, 0
      %v496 = vsel %vm452, %v440, 0
      %v499 = vsel %vm452, %v445, 0
      %501 = vmatprep.subr.mxu0 0.0
      %502 = vmatpush1.msra.mxu0 0.0
      %503 = vmatprep.subr.mxu0 0.0
      %504 = vmatpush1.msra.mxu0 0.0
      %505 = vmatprep.subr.mxu0 0.0
      %506 = vmatpush1.msra.mxu0 0.0
      %507 = vmatprep.subr.mxu0 0.0
      %508 = vmatpush1.msra.mxu0 0.0
      %509 = vmatprep.subr.mxu0 0.0
      %510 = vmatpush1.msra.mxu0 0.0
      %511 = vmatprep.subr.mxu0 0.0
      %512 = vmatpush1.msra.mxu0 0.0
      %513 = vmatprep.subr.mxu0 0.0
      %514 = vmatpush1.msra.mxu0 0.0
      %515 = vmatprep.subr.mxu0 0.0
      %516 = vmatpush1.msra.mxu0 0.0
      %517 = vmatprep.subr.mxu0 0.0
      %518 = vmatpush1.msra.mxu0 0.0
      %519 = vmatprep.subr.mxu0 0.0
      %520 = vmatpush1.msra.mxu0 0.0
      %521 = vmatprep.subr.mxu0 0.0
      %522 = vmatpush1.msra.mxu0 0.0
      %523 = vmatprep.subr.mxu0 0.0
      %524 = vmatpush1.msra.mxu0 0.0
      %525 = vmatprep.subr.mxu0 0.0
      %526 = vmatpush1.msra.mxu0 %v236
      %527 = vmatprep.subr.mxu0 0.0
      %528 = vmatpush1.msra.mxu0 %v235
      %529 = vmatprep.subr.mxu0 0.0
      %530 = vmatpush1.msra.mxu0 %v234
      %531 = vmatprep.subr.mxu0 0.0
      %532 = vmatpush1.msra.mxu0 %v233
      %533 = vmatprep.subr.mxu0 0.0
      %534 = vmatpush2.msra.mxu0 0.0
      %535 = vmatprep.subr.mxu0 0.0
      %536 = vmatpush2.msra.mxu0 0.0
      %537 = vmatprep.subr.mxu0 0.0
      %538 = vmatpush2.msra.mxu0 0.0
      %539 = vmatprep.subr.mxu0 0.0
      %540 = vmatpush2.msra.mxu0 0.0
      %541 = vmatprep.subr.mxu0 0.0
      %542 = vmatpush2.msra.mxu0 0.0
      %543 = vmatprep.subr.mxu0 0.0
      %544 = vmatpush2.msra.mxu0 0.0
      %545 = vmatprep.subr.mxu0 0.0
      %546 = vmatpush2.msra.mxu0 0.0
      %547 = vmatprep.subr.mxu0 0.0
      %548 = vmatpush2.msra.mxu0 0.0
      %549 = vmatprep.subr.mxu0 0.0
      %550 = vmatpush2.msra.mxu0 0.0
      %551 = vmatprep.subr.mxu0 0.0
      %552 = vmatpush2.msra.mxu0 0.0
      %553 = vmatprep.subr.mxu0 0.0
      %554 = vmatpush2.msra.mxu0 0.0
      %555 = vmatprep.subr.mxu0 0.0
      %556 = vmatpush2.msra.mxu0 0.0
      %557 = vmatprep.subr.mxu0 0.0
      %558 = vmatpush2.msra.mxu0 0.0
      %559 = vmatprep.subr.mxu0 0.0
      %560 = vmatpush2.msra.mxu0 0.0
      %561 = vmatprep.subr.mxu0 0.0
      %562 = vmatpush2.msra.mxu0 0.0
      %563 = vmatprep.subr.mxu0 0.0
      %564 = vmatpush2.msra.mxu0 0.0
      %565 = vmatprep.mubr.f32.mxu0 0.0
      %566 = vmatmul.mubr.f32.gmra.mxu0 %v454
      %v567 = vpop.f32.mrf.mxu0
      %v568 = vadd.f32 %v451, %v567
      %v569 = vpop.f32.mrf.mxu0
      %570 = vmatprep.mubr.f32.mxu0 0.0
      %571 = vmatmul.mubr.f32.gmra.mxu0 %v457
      %v572 = vpop.f32.mrf.mxu0
      %v573 = vadd.f32 %v451, %v572
      %v574 = vpop.f32.mrf.mxu0
      %575 = vmatprep.mubr.f32.mxu0 0.0
      %576 = vmatmul.mubr.f32.gmra.mxu0 %v460
      %v577 = vpop.f32.mrf.mxu0
      %v578 = vadd.f32 %v451, %v577
      %v579 = vpop.f32.mrf.mxu0
      %580 = vmatprep.mubr.f32.mxu0 0.0
      %581 = vmatmul.mubr.f32.gmra.mxu0 %v463
      %v582 = vpop.f32.mrf.mxu0
      %v583 = vadd.f32 %v451, %v582
      %v584 = vpop.f32.mrf.mxu0
      %585 = vmatprep.mubr.f32.mxu0 0.0
      %586 = vmatmul.mubr.f32.gmra.mxu0 %v466
      %v587 = vpop.f32.mrf.mxu0
      %v588 = vadd.f32 %v451, %v587
      %v589 = vpop.f32.mrf.mxu0
      %590 = vmatprep.mubr.f32.mxu0 0.0
      %591 = vmatmul.mubr.f32.gmra.mxu0 %v469
      %v592 = vpop.f32.mrf.mxu0
      %v593 = vadd.f32 %v451, %v592
      %v594 = vpop.f32.mrf.mxu0
      %595 = vmatprep.mubr.f32.mxu0 0.0
      %596 = vmatmul.mubr.f32.gmra.mxu0 %v472
      %v597 = vpop.f32.mrf.mxu0
      %v598 = vadd.f32 %v451, %v597
      %v599 = vpop.f32.mrf.mxu0
      %600 = vmatprep.mubr.f32.mxu0 0.0
      %601 = vmatmul.mubr.f32.gmra.mxu0 %v475
      %v602 = vpop.f32.mrf.mxu0
      %v603 = vadd.f32 %v451, %v602
      %v604 = vpop.f32.mrf.mxu0
      %605 = vmatprep.mubr.f32.mxu0 0.0
      %606 = vmatmul.mubr.f32.gmra.mxu0 %v478
      %v607 = vpop.f32.mrf.mxu0
      %v608 = vadd.f32 %v451, %v607
      %v609 = vpop.f32.mrf.mxu0
      %610 = vmatprep.mubr.f32.mxu0 0.0
      %611 = vmatmul.mubr.f32.gmra.mxu0 %v481
      %v612 = vpop.f32.mrf.mxu0
      %v613 = vadd.f32 %v451, %v612
      %v614 = vpop.f32.mrf.mxu0
      %615 = vmatprep.mubr.f32.mxu0 0.0
      %616 = vmatmul.mubr.f32.gmra.mxu0 %v484
      %v617 = vpop.f32.mrf.mxu0
      %v618 = vadd.f32 %v451, %v617
      %v619 = vpop.f32.mrf.mxu0
      %620 = vmatprep.mubr.f32.mxu0 0.0
      %621 = vmatmul.mubr.f32.gmra.mxu0 %v487
      %v622 = vpop.f32.mrf.mxu0
      %v623 = vadd.f32 %v451, %v622
      %v624 = vpop.f32.mrf.mxu0
      %625 = vmatprep.mubr.f32.mxu0 0.0
      %626 = vmatmul.mubr.f32.gmra.mxu0 %v490
      %v627 = vpop.f32.mrf.mxu0
      %v628 = vadd.f32 %v451, %v627
      %v629 = vpop.f32.mrf.mxu0
      %630 = vmatprep.mubr.f32.mxu0 0.0
      %631 = vmatmul.mubr.f32.gmra.mxu0 %v493
      %v632 = vpop.f32.mrf.mxu0
      %v633 = vadd.f32 %v451, %v632
      %v634 = vpop.f32.mrf.mxu0
      %635 = vmatprep.mubr.f32.mxu0 0.0
      %636 = vmatmul.mubr.f32.gmra.mxu0 %v496
      %v637 = vpop.f32.mrf.mxu0
      %v638 = vadd.f32 %v451, %v637
      %v639 = vpop.f32.mrf.mxu0
      %640 = vmatprep.mubr.f32.mxu0 0.0
      %641 = vmatmul.mubr.f32.gmra.mxu0 %v499
      %v642 = vpop.f32.mrf.mxu0
      %v643 = vadd.f32 %v451, %v642
      %v644 = vpop.f32.mrf.mxu0
      %645 = vdwg.mxu0
      %v646 = vmax.f32 %v568, 0.0
      %v647 = vmax.f32 %v573, 0.0
      %v648 = vmax.f32 %v578, 0.0
      %v649 = vmax.f32 %v583, 0.0
      %v650 = vmax.f32 %v588, 0.0
      %v651 = vmax.f32 %v593, 0.0
      %v652 = vmax.f32 %v598, 0.0
      %v653 = vmax.f32 %v603, 0.0
      %v654 = vmax.f32 %v608, 0.0
      %v655 = vmax.f32 %v613, 0.0
      %v656 = vmax.f32 %v618, 0.0
      %v657 = vmax.f32 %v623, 0.0
      %v658 = vmax.f32 %v628, 0.0
      %v659 = vmax.f32 %v633, 0.0
      %v660 = vmax.f32 %v638, 0.0
      %v661 = vmax.f32 %v643, 0.0
      %v662 = vlaneseq
      %v663 = vshrl.u32 %v662, 7
      %v664 = vsub.s32 2, %v663
      %v665 = vrot.slane %v249, %v664
      %v667 = vsel %vm452, %v646, 0
      %v670 = vsel %vm452, %v647, 0
      %v673 = vsel %vm452, %v648, 0
      %v676 = vsel %vm452, %v649, 0
      %v679 = vsel %vm452, %v650, 0
      %v682 = vsel %vm452, %v651, 0
      %v685 = vsel %vm452, %v652, 0
      %v688 = vsel %vm452, %v653, 0
      %v691 = vsel %vm452, %v654, 0
      %v694 = vsel %vm452, %v655, 0
      %v697 = vsel %vm452, %v656, 0
      %v700 = vsel %vm452, %v657, 0
      %v703 = vsel %vm452, %v658, 0
      %v706 = vsel %vm452, %v659, 0
      %v709 = vsel %vm452, %v660, 0
      %v712 = vsel %vm452, %v661, 0
      %714 = vmatprep.subr.mxu0 0.0
      %715 = vmatpush1.msra.mxu0 0.0
      %716 = vmatprep.subr.mxu0 0.0
      %717 = vmatpush1.msra.mxu0 0.0
      %718 = vmatprep.subr.mxu0 0.0
      %719 = vmatpush1.msra.mxu0 0.0
      %720 = vmatprep.subr.mxu0 0.0
      %721 = vmatpush1.msra.mxu0 0.0
      %722 = vmatprep.subr.mxu0 0.0
      %723 = vmatpush1.msra.mxu0 0.0
      %724 = vmatprep.subr.mxu0 0.0
      %725 = vmatpush1.msra.mxu0 0.0
      %726 = vmatprep.subr.mxu0 0.0
      %727 = vmatpush1.msra.mxu0 0.0
      %728 = vmatprep.subr.mxu0 0.0
      %729 = vmatpush1.msra.mxu0 0.0
      %730 = vmatprep.subr.mxu0 0.0
      %731 = vmatpush1.msra.mxu0 0.0
      %732 = vmatprep.subr.mxu0 0.0
      %733 = vmatpush1.msra.mxu0 0.0
      %734 = vmatprep.subr.mxu0 0.0
      %735 = vmatpush1.msra.mxu0 0.0
      %736 = vmatprep.subr.mxu0 0.0
      %737 = vmatpush1.msra.mxu0 0.0
      %738 = vmatprep.subr.mxu0 0.0
      %739 = vmatpush1.msra.mxu0 %v240
      %740 = vmatprep.subr.mxu0 0.0
      %741 = vmatpush1.msra.mxu0 %v239
      %742 = vmatprep.subr.mxu0 0.0
      %743 = vmatpush1.msra.mxu0 %v238
      %744 = vmatprep.subr.mxu0 0.0
      %745 = vmatpush1.msra.mxu0 %v237
      %746 = vmatprep.subr.mxu0 0.0
      %747 = vmatpush2.msra.mxu0 0.0
      %748 = vmatprep.subr.mxu0 0.0
      %749 = vmatpush2.msra.mxu0 0.0
      %750 = vmatprep.subr.mxu0 0.0
      %751 = vmatpush2.msra.mxu0 0.0
      %752 = vmatprep.subr.mxu0 0.0
      %753 = vmatpush2.msra.mxu0 0.0
      %754 = vmatprep.subr.mxu0 0.0
      %755 = vmatpush2.msra.mxu0 0.0
      %756 = vmatprep.subr.mxu0 0.0
      %757 = vmatpush2.msra.mxu0 0.0
      %758 = vmatprep.subr.mxu0 0.0
      %759 = vmatpush2.msra.mxu0 0.0
      %760 = vmatprep.subr.mxu0 0.0
      %761 = vmatpush2.msra.mxu0 0.0
      %762 = vmatprep.subr.mxu0 0.0
      %763 = vmatpush2.msra.mxu0 0.0
      %764 = vmatprep.subr.mxu0 0.0
      %765 = vmatpush2.msra.mxu0 0.0
      %766 = vmatprep.subr.mxu0 0.0
      %767 = vmatpush2.msra.mxu0 0.0
      %768 = vmatprep.subr.mxu0 0.0
      %769 = vmatpush2.msra.mxu0 0.0
      %770 = vmatprep.subr.mxu0 0.0
      %771 = vmatpush2.msra.mxu0 0.0
      %772 = vmatprep.subr.mxu0 0.0
      %773 = vmatpush2.msra.mxu0 0.0
      %774 = vmatprep.subr.mxu0 0.0
      %775 = vmatpush2.msra.mxu0 0.0
      %776 = vmatprep.subr.mxu0 0.0
      %777 = vmatpush2.msra.mxu0 0.0
      %778 = vmatprep.mubr.f32.mxu0 0.0
      %779 = vmatmul.mubr.f32.gmra.mxu0 %v667
      %v780 = vpop.f32.mrf.mxu0
      %v781 = vadd.f32 %v665, %v780
      %v782 = vpop.f32.mrf.mxu0
      %783 = vmatprep.mubr.f32.mxu0 0.0
      %784 = vmatmul.mubr.f32.gmra.mxu0 %v670
      %v785 = vpop.f32.mrf.mxu0
      %v786 = vadd.f32 %v665, %v785
      %v787 = vpop.f32.mrf.mxu0
      %788 = vmatprep.mubr.f32.mxu0 0.0
      %789 = vmatmul.mubr.f32.gmra.mxu0 %v673
      %v790 = vpop.f32.mrf.mxu0
      %v791 = vadd.f32 %v665, %v790
      %v792 = vpop.f32.mrf.mxu0
      %793 = vmatprep.mubr.f32.mxu0 0.0
      %794 = vmatmul.mubr.f32.gmra.mxu0 %v676
      %v795 = vpop.f32.mrf.mxu0
      %v796 = vadd.f32 %v665, %v795
      %v797 = vpop.f32.mrf.mxu0
      %798 = vmatprep.mubr.f32.mxu0 0.0
      %799 = vmatmul.mubr.f32.gmra.mxu0 %v679
      %v800 = vpop.f32.mrf.mxu0
      %v801 = vadd.f32 %v665, %v800
      %v802 = vpop.f32.mrf.mxu0
      %803 = vmatprep.mubr.f32.mxu0 0.0
      %804 = vmatmul.mubr.f32.gmra.mxu0 %v682
      %v805 = vpop.f32.mrf.mxu0
      %v806 = vadd.f32 %v665, %v805
      %v807 = vpop.f32.mrf.mxu0
      %808 = vmatprep.mubr.f32.mxu0 0.0
      %809 = vmatmul.mubr.f32.gmra.mxu0 %v685
      %v810 = vpop.f32.mrf.mxu0
      %v811 = vadd.f32 %v665, %v810
      %v812 = vpop.f32.mrf.mxu0
      %813 = vmatprep.mubr.f32.mxu0 0.0
      %814 = vmatmul.mubr.f32.gmra.mxu0 %v688
      %v815 = vpop.f32.mrf.mxu0
      %v816 = vadd.f32 %v665, %v815
      %v817 = vpop.f32.mrf.mxu0
      %818 = vmatprep.mubr.f32.mxu0 0.0
      %819 = vmatmul.mubr.f32.gmra.mxu0 %v691
      %v820 = vpop.f32.mrf.mxu0
      %v821 = vadd.f32 %v665, %v820
      %v822 = vpop.f32.mrf.mxu0
      %823 = vmatprep.mubr.f32.mxu0 0.0
      %824 = vmatmul.mubr.f32.gmra.mxu0 %v694
      %v825 = vpop.f32.mrf.mxu0
      %v826 = vadd.f32 %v665, %v825
      %v827 = vpop.f32.mrf.mxu0
      %828 = vmatprep.mubr.f32.mxu0 0.0
      %829 = vmatmul.mubr.f32.gmra.mxu0 %v697
      %v830 = vpop.f32.mrf.mxu0
      %v831 = vadd.f32 %v665, %v830
      %v832 = vpop.f32.mrf.mxu0
      %833 = vmatprep.mubr.f32.mxu0 0.0
      %834 = vmatmul.mubr.f32.gmra.mxu0 %v700
      %v835 = vpop.f32.mrf.mxu0
      %v836 = vadd.f32 %v665, %v835
      %v837 = vpop.f32.mrf.mxu0
      %838 = vmatprep.mubr.f32.mxu0 0.0
      %839 = vmatmul.mubr.f32.gmra.mxu0 %v703
      %v840 = vpop.f32.mrf.mxu0
      %v841 = vadd.f32 %v665, %v840
      %v842 = vpop.f32.mrf.mxu0
      %843 = vmatprep.mubr.f32.mxu0 0.0
      %844 = vmatmul.mubr.f32.gmra.mxu0 %v706
      %v845 = vpop.f32.mrf.mxu0
      %v846 = vadd.f32 %v665, %v845
      %v847 = vpop.f32.mrf.mxu0
      %848 = vmatprep.mubr.f32.mxu0 0.0
      %849 = vmatmul.mubr.f32.gmra.mxu0 %v709
      %v850 = vpop.f32.mrf.mxu0
      %v851 = vadd.f32 %v665, %v850
      %v852 = vpop.f32.mrf.mxu0
      %853 = vmatprep.mubr.f32.mxu0 0.0
      %854 = vmatmul.mubr.f32.gmra.mxu0 %v712
      %v855 = vpop.f32.mrf.mxu0
      %v856 = vadd.f32 %v665, %v855
      %v857 = vpop.f32.mrf.mxu0
      %858 = vdwg.mxu0
      %v859 = vmax.f32 %v781, 0.0
      %v860 = vmax.f32 %v786, 0.0
      %v861 = vmax.f32 %v791, 0.0
      %v862 = vmax.f32 %v796, 0.0
      %v863 = vmax.f32 %v801, 0.0
      %v864 = vmax.f32 %v806, 0.0
      %v865 = vmax.f32 %v811, 0.0
      %v866 = vmax.f32 %v816, 0.0
      %v867 = vmax.f32 %v821, 0.0
      %v868 = vmax.f32 %v826, 0.0
      %v869 = vmax.f32 %v831, 0.0
      %v870 = vmax.f32 %v836, 0.0
      %v871 = vmax.f32 %v841, 0.0
      %v872 = vmax.f32 %v846, 0.0
      %v873 = vmax.f32 %v851, 0.0
      %v874 = vmax.f32 %v856, 0.0
      %v875 = vlaneseq
      %v876 = vshrl.u32 %v875, 7
      %v877 = vsub.s32 3, %v876
      %v878 = vrot.slane %v249, %v877
      %v880 = vsel %vm452, %v859, 0
      %v883 = vsel %vm452, %v860, 0
      %v886 = vsel %vm452, %v861, 0
      %v889 = vsel %vm452, %v862, 0
      %v892 = vsel %vm452, %v863, 0
      %v895 = vsel %vm452, %v864, 0
      %v898 = vsel %vm452, %v865, 0
      %v901 = vsel %vm452, %v866, 0
      %v904 = vsel %vm452, %v867, 0
      %v907 = vsel %vm452, %v868, 0
      %v910 = vsel %vm452, %v869, 0
      %v913 = vsel %vm452, %v870, 0
      %v916 = vsel %vm452, %v871, 0
      %v919 = vsel %vm452, %v872, 0
      %v922 = vsel %vm452, %v873, 0
      %v925 = vsel %vm452, %v874, 0
      %927 = vmatprep.subr.mxu0 0.0
      %928 = vmatpush1.msra.mxu0 0.0
      %929 = vmatprep.subr.mxu0 0.0
      %930 = vmatpush1.msra.mxu0 0.0
      %931 = vmatprep.subr.mxu0 0.0
      %932 = vmatpush1.msra.mxu0 0.0
      %933 = vmatprep.subr.mxu0 0.0
      %934 = vmatpush1.msra.mxu0 0.0
      %935 = vmatprep.subr.mxu0 0.0
      %936 = vmatpush1.msra.mxu0 0.0
      %937 = vmatprep.subr.mxu0 0.0
      %938 = vmatpush1.msra.mxu0 0.0
      %939 = vmatprep.subr.mxu0 0.0
      %940 = vmatpush1.msra.mxu0 0.0
      %941 = vmatprep.subr.mxu0 0.0
      %942 = vmatpush1.msra.mxu0 0.0
      %943 = vmatprep.subr.mxu0 0.0
      %944 = vmatpush1.msra.mxu0 0.0
      %945 = vmatprep.subr.mxu0 0.0
      %946 = vmatpush1.msra.mxu0 0.0
      %947 = vmatprep.subr.mxu0 0.0
      %948 = vmatpush1.msra.mxu0 0.0
      %949 = vmatprep.subr.mxu0 0.0
      %950 = vmatpush1.msra.mxu0 0.0
      %951 = vmatprep.subr.mxu0 0.0
      %952 = vmatpush1.msra.mxu0 %v244
      %953 = vmatprep.subr.mxu0 0.0
      %954 = vmatpush1.msra.mxu0 %v243
      %955 = vmatprep.subr.mxu0 0.0
      %956 = vmatpush1.msra.mxu0 %v242
      %957 = vmatprep.subr.mxu0 0.0
      %958 = vmatpush1.msra.mxu0 %v241
      %959 = vmatprep.subr.mxu0 0.0
      %960 = vmatpush2.msra.mxu0 0.0
      %961 = vmatprep.subr.mxu0 0.0
      %962 = vmatpush2.msra.mxu0 0.0
      %963 = vmatprep.subr.mxu0 0.0
      %964 = vmatpush2.msra.mxu0 0.0
      %965 = vmatprep.subr.mxu0 0.0
      %966 = vmatpush2.msra.mxu0 0.0
      %967 = vmatprep.subr.mxu0 0.0
      %968 = vmatpush2.msra.mxu0 0.0
      %969 = vmatprep.subr.mxu0 0.0
      %970 = vmatpush2.msra.mxu0 0.0
      %971 = vmatprep.subr.mxu0 0.0
      %972 = vmatpush2.msra.mxu0 0.0
      %973 = vmatprep.subr.mxu0 0.0
      %974 = vmatpush2.msra.mxu0 0.0
      %975 = vmatprep.subr.mxu0 0.0
      %976 = vmatpush2.msra.mxu0 0.0
      %977 = vmatprep.subr.mxu0 0.0
      %978 = vmatpush2.msra.mxu0 0.0
      %979 = vmatprep.subr.mxu0 0.0
      %980 = vmatpush2.msra.mxu0 0.0
      %981 = vmatprep.subr.mxu0 0.0
      %982 = vmatpush2.msra.mxu0 0.0
      %983 = vmatprep.subr.mxu0 0.0
      %984 = vmatpush2.msra.mxu0 0.0
      %985 = vmatprep.subr.mxu0 0.0
      %986 = vmatpush2.msra.mxu0 0.0
      %987 = vmatprep.subr.mxu0 0.0
      %988 = vmatpush2.msra.mxu0 0.0
      %989 = vmatprep.subr.mxu0 0.0
      %990 = vmatpush2.msra.mxu0 0.0
      %991 = vmatprep.mubr.f32.mxu0 0.0
      %992 = vmatmul.mubr.f32.gmra.mxu0 %v880
      %v993 = vpop.f32.mrf.mxu0
      %v994 = vadd.f32 %v878, %v993
      %v995 = vpop.f32.mrf.mxu0
      %996 = vmatprep.mubr.f32.mxu0 0.0
      %997 = vmatmul.mubr.f32.gmra.mxu0 %v883
      %v998 = vpop.f32.mrf.mxu0
      %v999 = vadd.f32 %v878, %v998
      %v1000 = vpop.f32.mrf.mxu0
      %1001 = vmatprep.mubr.f32.mxu0 0.0
      %1002 = vmatmul.mubr.f32.gmra.mxu0 %v886
      %v1003 = vpop.f32.mrf.mxu0
      %v1004 = vadd.f32 %v878, %v1003
      %v1005 = vpop.f32.mrf.mxu0
      %1006 = vmatprep.mubr.f32.mxu0 0.0
      %1007 = vmatmul.mubr.f32.gmra.mxu0 %v889
      %v1008 = vpop.f32.mrf.mxu0
      %v1009 = vadd.f32 %v878, %v1008
      %v1010 = vpop.f32.mrf.mxu0
      %1011 = vmatprep.mubr.f32.mxu0 0.0
      %1012 = vmatmul.mubr.f32.gmra.mxu0 %v892
      %v1013 = vpop.f32.mrf.mxu0
      %v1014 = vadd.f32 %v878, %v1013
      %v1015 = vpop.f32.mrf.mxu0
      %1016 = vmatprep.mubr.f32.mxu0 0.0
      %1017 = vmatmul.mubr.f32.gmra.mxu0 %v895
      %v1018 = vpop.f32.mrf.mxu0
      %v1019 = vadd.f32 %v878, %v1018
      %v1020 = vpop.f32.mrf.mxu0
      %1021 = vmatprep.mubr.f32.mxu0 0.0
      %1022 = vmatmul.mubr.f32.gmra.mxu0 %v898
      %v1023 = vpop.f32.mrf.mxu0
      %v1024 = vadd.f32 %v878, %v1023
      %v1025 = vpop.f32.mrf.mxu0
      %1026 = vmatprep.mubr.f32.mxu0 0.0
      %1027 = vmatmul.mubr.f32.gmra.mxu0 %v901
      %v1028 = vpop.f32.mrf.mxu0
      %v1029 = vadd.f32 %v878, %v1028
      %v1030 = vpop.f32.mrf.mxu0
      %1031 = vmatprep.mubr.f32.mxu0 0.0
      %1032 = vmatmul.mubr.f32.gmra.mxu0 %v904
      %v1033 = vpop.f32.mrf.mxu0
      %v1034 = vadd.f32 %v878, %v1033
      %v1035 = vpop.f32.mrf.mxu0
      %1036 = vmatprep.mubr.f32.mxu0 0.0
      %1037 = vmatmul.mubr.f32.gmra.mxu0 %v907
      %v1038 = vpop.f32.mrf.mxu0
      %v1039 = vadd.f32 %v878, %v1038
      %v1040 = vpop.f32.mrf.mxu0
      %1041 = vmatprep.mubr.f32.mxu0 0.0
      %1042 = vmatmul.mubr.f32.gmra.mxu0 %v910
      %v1043 = vpop.f32.mrf.mxu0
      %v1044 = vadd.f32 %v878, %v1043
      %v1045 = vpop.f32.mrf.mxu0
      %1046 = vmatprep.mubr.f32.mxu0 0.0
      %1047 = vmatmul.mubr.f32.gmra.mxu0 %v913
      %v1048 = vpop.f32.mrf.mxu0
      %v1049 = vadd.f32 %v878, %v1048
      %v1050 = vpop.f32.mrf.mxu0
      %1051 = vmatprep.mubr.f32.mxu0 0.0
      %1052 = vmatmul.mubr.f32.gmra.mxu0 %v916
      %v1053 = vpop.f32.mrf.mxu0
      %v1054 = vadd.f32 %v878, %v1053
      %v1055 = vpop.f32.mrf.mxu0
      %1056 = vmatprep.mubr.f32.mxu0 0.0
      %1057 = vmatmul.mubr.f32.gmra.mxu0 %v919
      %v1058 = vpop.f32.mrf.mxu0
      %v1059 = vadd.f32 %v878, %v1058
      %v1060 = vpop.f32.mrf.mxu0
      %1061 = vmatprep.mubr.f32.mxu0 0.0
      %1062 = vmatmul.mubr.f32.gmra.mxu0 %v922
      %v1063 = vpop.f32.mrf.mxu0
      %v1064 = vadd.f32 %v878, %v1063
      %v1065 = vpop.f32.mrf.mxu0
      %1066 = vmatprep.mubr.f32.mxu0 0.0
      %1067 = vmatmul.mubr.f32.gmra.mxu0 %v925
      %v1068 = vpop.f32.mrf.mxu0
      %v1069 = vadd.f32 %v878, %v1068
      %v1070 = vpop.f32.mrf.mxu0
      %1071 = vdwg.mxu0
      %v1072 = vlaneseq
      %v1073 = vshrl.u32 %v1072, 7
      %v1074 = vsub.s32 4, %v1073
      %v1075 = vrot.slane %v249, %v1074
      %1076 = vmatprep.subr.mxu0 0.0
      %1077 = vmatpush1.msra.mxu0 0.0
      %1078 = vmatprep.subr.mxu0 0.0
      %1079 = vmatpush1.msra.mxu0 0.0
      %1080 = vmatprep.subr.mxu0 0.0
      %1081 = vmatpush1.msra.mxu0 0.0
      %1082 = vmatprep.subr.mxu0 0.0
      %1083 = vmatpush1.msra.mxu0 0.0
      %1084 = vmatprep.subr.mxu0 0.0
      %1085 = vmatpush1.msra.mxu0 0.0
      %1086 = vmatprep.subr.mxu0 0.0
      %1087 = vmatpush1.msra.mxu0 0.0
      %1088 = vmatprep.subr.mxu0 0.0
      %1089 = vmatpush1.msra.mxu0 0.0
      %1090 = vmatprep.subr.mxu0 0.0
      %1091 = vmatpush1.msra.mxu0 0.0
      %1092 = vmatprep.subr.mxu0 0.0
      %1093 = vmatpush1.msra.mxu0 0.0
      %1094 = vmatprep.subr.mxu0 0.0
      %1095 = vmatpush1.msra.mxu0 0.0
      %1096 = vmatprep.subr.mxu0 0.0
      %1097 = vmatpush1.msra.mxu0 0.0
      %1098 = vmatprep.subr.mxu0 0.0
      %1099 = vmatpush1.msra.mxu0 0.0
      %1100 = vmatprep.subr.mxu0 0.0
      %1101 = vmatpush1.msra.mxu0 %v248
      %1102 = vmatprep.subr.mxu0 0.0
      %1103 = vmatpush1.msra.mxu0 %v247
      %1104 = vmatprep.subr.mxu0 0.0
      %1105 = vmatpush1.msra.mxu0 %v246
      %1106 = vmatprep.subr.mxu0 0.0
      %1107 = vmatpush1.msra.mxu0 %v245
      %1108 = vmatprep.subr.mxu0 0.0
      %1109 = vmatpush2.msra.mxu0 0.0
      %1110 = vmatprep.subr.mxu0 0.0
      %1111 = vmatpush2.msra.mxu0 0.0
      %1112 = vmatprep.subr.mxu0 0.0
      %1113 = vmatpush2.msra.mxu0 0.0
      %1114 = vmatprep.subr.mxu0 0.0
      %1115 = vmatpush2.msra.mxu0 0.0
      %1116 = vmatprep.subr.mxu0 0.0
      %1117 = vmatpush2.msra.mxu0 0.0
      %1118 = vmatprep.subr.mxu0 0.0
      %1119 = vmatpush2.msra.mxu0 0.0
      %1120 = vmatprep.subr.mxu0 0.0
      %1121 = vmatpush2.msra.mxu0 0.0
      %1122 = vmatprep.subr.mxu0 0.0
      %1123 = vmatpush2.msra.mxu0 0.0
      %1124 = vmatprep.subr.mxu0 0.0
      %1125 = vmatpush2.msra.mxu0 0.0
      %1126 = vmatprep.subr.mxu0 0.0
      %1127 = vmatpush2.msra.mxu0 0.0
      %1128 = vmatprep.subr.mxu0 0.0
      %1129 = vmatpush2.msra.mxu0 0.0
      %1130 = vmatprep.subr.mxu0 0.0
      %1131 = vmatpush2.msra.mxu0 0.0
      %1132 = vmatprep.subr.mxu0 0.0
      %1133 = vmatpush2.msra.mxu0 0.0
      %1134 = vmatprep.subr.mxu0 0.0
      %1135 = vmatpush2.msra.mxu0 0.0
      %1136 = vmatprep.subr.mxu0 0.0
      %1137 = vmatpush2.msra.mxu0 0.0
      %1138 = vmatprep.subr.mxu0 0.0
      %1139 = vmatpush2.msra.mxu0 0.0
      %1140 = vmatprep.mubr.f32.mxu0 0.0
      %1141 = vmatmul.mubr.f32.gmra.mxu0 %v880
      %v1142 = vpop.f32.mrf.mxu0
      %v1143 = vadd.f32 %v1075, %v1142
      %v1144 = vpop.f32.mrf.mxu0
      %1145 = vmatprep.mubr.f32.mxu0 0.0
      %1146 = vmatmul.mubr.f32.gmra.mxu0 %v883
      %v1147 = vpop.f32.mrf.mxu0
      %v1148 = vadd.f32 %v1075, %v1147
      %v1149 = vpop.f32.mrf.mxu0
      %1150 = vmatprep.mubr.f32.mxu0 0.0
      %1151 = vmatmul.mubr.f32.gmra.mxu0 %v886
      %v1152 = vpop.f32.mrf.mxu0
      %v1153 = vadd.f32 %v1075, %v1152
      %v1154 = vpop.f32.mrf.mxu0
      %1155 = vmatprep.mubr.f32.mxu0 0.0
      %1156 = vmatmul.mubr.f32.gmra.mxu0 %v889
      %v1157 = vpop.f32.mrf.mxu0
      %v1158 = vadd.f32 %v1075, %v1157
      %v1159 = vpop.f32.mrf.mxu0
      %1160 = vmatprep.mubr.f32.mxu0 0.0
      %1161 = vmatmul.mubr.f32.gmra.mxu0 %v892
      %v1162 = vpop.f32.mrf.mxu0
      %v1163 = vadd.f32 %v1075, %v1162
      %v1164 = vpop.f32.mrf.mxu0
      %1165 = vmatprep.mubr.f32.mxu0 0.0
      %1166 = vmatmul.mubr.f32.gmra.mxu0 %v895
      %v1167 = vpop.f32.mrf.mxu0
      %v1168 = vadd.f32 %v1075, %v1167
      %v1169 = vpop.f32.mrf.mxu0
      %1170 = vmatprep.mubr.f32.mxu0 0.0
      %1171 = vmatmul.mubr.f32.gmra.mxu0 %v898
      %v1172 = vpop.f32.mrf.mxu0
      %v1173 = vadd.f32 %v1075, %v1172
      %v1174 = vpop.f32.mrf.mxu0
      %1175 = vmatprep.mubr.f32.mxu0 0.0
      %1176 = vmatmul.mubr.f32.gmra.mxu0 %v901
      %v1177 = vpop.f32.mrf.mxu0
      %v1178 = vadd.f32 %v1075, %v1177
      %v1179 = vpop.f32.mrf.mxu0
      %1180 = vmatprep.mubr.f32.mxu0 0.0
      %1181 = vmatmul.mubr.f32.gmra.mxu0 %v904
      %v1182 = vpop.f32.mrf.mxu0
      %v1183 = vadd.f32 %v1075, %v1182
      %v1184 = vpop.f32.mrf.mxu0
      %1185 = vmatprep.mubr.f32.mxu0 0.0
      %1186 = vmatmul.mubr.f32.gmra.mxu0 %v907
      %v1187 = vpop.f32.mrf.mxu0
      %v1188 = vadd.f32 %v1075, %v1187
      %v1189 = vpop.f32.mrf.mxu0
      %1190 = vmatprep.mubr.f32.mxu0 0.0
      %1191 = vmatmul.mubr.f32.gmra.mxu0 %v910
      %v1192 = vpop.f32.mrf.mxu0
      %v1193 = vadd.f32 %v1075, %v1192
      %v1194 = vpop.f32.mrf.mxu0
      %1195 = vmatprep.mubr.f32.mxu0 0.0
      %1196 = vmatmul.mubr.f32.gmra.mxu0 %v913
      %v1197 = vpop.f32.mrf.mxu0
      %v1198 = vadd.f32 %v1075, %v1197
      %v1199 = vpop.f32.mrf.mxu0
      %1200 = vmatprep.mubr.f32.mxu0 0.0
      %1201 = vmatmul.mubr.f32.gmra.mxu0 %v916
      %v1202 = vpop.f32.mrf.mxu0
      %v1203 = vadd.f32 %v1075, %v1202
      %v1204 = vpop.f32.mrf.mxu0
      %1205 = vmatprep.mubr.f32.mxu0 0.0
      %1206 = vmatmul.mubr.f32.gmra.mxu0 %v919
      %v1207 = vpop.f32.mrf.mxu0
      %v1208 = vadd.f32 %v1075, %v1207
      %v1209 = vpop.f32.mrf.mxu0
      %1210 = vmatprep.mubr.f32.mxu0 0.0
      %1211 = vmatmul.mubr.f32.gmra.mxu0 %v922
      %v1212 = vpop.f32.mrf.mxu0
      %v1213 = vadd.f32 %v1075, %v1212
      %v1214 = vpop.f32.mrf.mxu0
      %1215 = vmatprep.mubr.f32.mxu0 0.0
      %1216 = vmatmul.mubr.f32.gmra.mxu0 %v925
      %v1217 = vpop.f32.mrf.mxu0
      %v1218 = vadd.f32 %v1075, %v1217
      %v1219 = vpop.f32.mrf.mxu0
      %1220 = vdwg.mxu0
      %1221 = vst.msk [vmem:[%s207] sm:$0xff] %vm254, %v994
      %1222 = vst.msk [vmem:[%s207 + $0x8] sm:$0xff] %vm254, %v999
      %1223 = vst.msk [vmem:[%s207 + $0x10] sm:$0xff] %vm254, %v1004
      %1224 = vst.msk [vmem:[%s207 + $0x18] sm:$0xff] %vm254, %v1009
      %1225 = vst.msk [vmem:[%s207 + $0x20] sm:$0xff] %vm254, %v1014
      %1226 = vst.msk [vmem:[%s207 + $0x28] sm:$0xff] %vm254, %v1019
      %1227 = vst.msk [vmem:[%s207 + $0x30] sm:$0xff] %vm254, %v1024
      %1228 = vst.msk [vmem:[%s207 + $0x38] sm:$0xff] %vm254, %v1029
      %1229 = vst.msk [vmem:[%s207 + $0x40] sm:$0xff] %vm254, %v1034
      %1230 = vst.msk [vmem:[%s207 + $0x48] sm:$0xff] %vm254, %v1039
      %1231 = vst.msk [vmem:[%s207 + $0x50] sm:$0xff] %vm254, %v1044
      %1232 = vst.msk [vmem:[%s207 + $0x58] sm:$0xff] %vm254, %v1049
      %1233 = vst.msk [vmem:[%s207 + $0x60] sm:$0xff] %vm254, %v1054
      %1234 = vst.msk [vmem:[%s207 + $0x68] sm:$0xff] %vm254, %v1059
      %1235 = vst.msk [vmem:[%s207 + $0x70] sm:$0xff] %vm254, %v1064
      %1236 = vst.msk [vmem:[%s207 + $0x78] sm:$0xff] %vm254, %v1069
      %vm1237 = vcmask 97280
      %1238 = vst.msk [vmem:[%s213] sm:$0xff] %vm1237, %v1143
      %1239 = vst.msk [vmem:[%s213 + $0x8] sm:$0xff] %vm1237, %v1148
      %1240 = vst.msk [vmem:[%s213 + $0x10] sm:$0xff] %vm1237, %v1153
      %1241 = vst.msk [vmem:[%s213 + $0x18] sm:$0xff] %vm1237, %v1158
      %1242 = vst.msk [vmem:[%s213 + $0x20] sm:$0xff] %vm1237, %v1163
      %1243 = vst.msk [vmem:[%s213 + $0x28] sm:$0xff] %vm1237, %v1168
      %1244 = vst.msk [vmem:[%s213 + $0x30] sm:$0xff] %vm1237, %v1173
      %1245 = vst.msk [vmem:[%s213 + $0x38] sm:$0xff] %vm1237, %v1178
      %1246 = vst.msk [vmem:[%s213 + $0x40] sm:$0xff] %vm1237, %v1183
      %1247 = vst.msk [vmem:[%s213 + $0x48] sm:$0xff] %vm1237, %v1188
      %1248 = vst.msk [vmem:[%s213 + $0x50] sm:$0xff] %vm1237, %v1193
      %1249 = vst.msk [vmem:[%s213 + $0x58] sm:$0xff] %vm1237, %v1198
      %1250 = vst.msk [vmem:[%s213 + $0x60] sm:$0xff] %vm1237, %v1203
      %1251 = vst.msk [vmem:[%s213 + $0x68] sm:$0xff] %vm1237, %v1208
      %1252 = vst.msk [vmem:[%s213 + $0x70] sm:$0xff] %vm1237, %v1213
      %1253 = vst.msk [vmem:[%s213 + $0x78] sm:$0xff] %vm1237, %v1218
      %s1254 = smul.u32 16, %s16
      %p1255 = scmp.lt.s32.totalorder %s1254, 31
      %s1256 = scalar_select %p1255, %s1254, 31
      %s1257 = smul.addr %s1256, 8
      %s1258 = scalar_lea.vmem %s3, %s1257
      %s1259 = smul.u32 16, %s16
      %p1260 = scmp.lt.s32.totalorder %s1259, 31
      %s1261 = scalar_select %p1260, %s1259, 31
      %s1262 = smul.addr %s1261, 8
      %s1263 = scalar_lea.vmem %s4, %s1262
      // Predicated region
      $region33: #{tpu_custom_call.1} parent=31 // pred_check
        %p1264 = pneg %p102
      $region34: #{tpu_custom_call.1} parent=31 // pred_check_branch
        %1266 = sbr.rel (%p1264) target = $region36
      $region35: #{tpu_custom_call.1} parent=31 // pred_region
        %s1267 = smul.u32 16, %s16
      $region36: #{tpu_custom_call.1} parent=31 // pred_fallthru
        _
      // Predicated region
      $region37: #{tpu_custom_call.1} parent=31 // pred_check
        %p1268 = pneg %p128
      $region38: #{tpu_custom_call.1} parent=31 // pred_check_branch
        %1270 = sbr.rel (%p1268) target = $region40
      $region39: #{tpu_custom_call.1} parent=31 // pred_region
        %s1271 = smul.u32 16, %s16
      $region40: #{tpu_custom_call.1} parent=31 // pred_fallthru
        _
    $region32: #{tpu_custom_call.1} parent=5 // pred_fallthru
      _
    %p1272 = scmp.le.s32.totalorder 2, %s11
    // Predicated region
    $region41: #{tpu_custom_call.1} parent=5 // pred_check
      %p1273 = pneg %p1272
    $region42: #{tpu_custom_call.1} parent=5 // pred_check_branch
      %1275 = sbr.rel (%p1273) target = $region44
    $region43: #{tpu_custom_call.1} parent=5 // pred_region
      %s1276 = ssub.s32 %s11, 2
      // Predicated region
      $region45: #{tpu_custom_call.1} parent=43 // pred_check
        %p1277 = pneg %p108
      $region46: #{tpu_custom_call.1} parent=43 // pred_check_branch
        %1279 = sbr.rel (%p1277) target = $region48
      $region47: #{tpu_custom_call.1} parent=43 // pred_region
        %s1280 = smul.u32 16, %s17
        %p1281 = scmp.lt.s32.totalorder %s1280, 31
        %s1282 = scalar_select %p1281, %s1280, 31
        %s1283 = smul.addr %s1282, 8
        %s1284 = scalar_lea.vmem %s3, %s1283
      $region48: #{tpu_custom_call.1} parent=43 // pred_fallthru
        _
      // Predicated region
      $region49: #{tpu_custom_call.1} parent=43 // pred_check
        %p1285 = pneg %p134
      $region50: #{tpu_custom_call.1} parent=43 // pred_check_branch
        %1287 = sbr.rel (%p1285) target = $region52
      $region51: #{tpu_custom_call.1} parent=43 // pred_region
        %s1288 = smul.u32 16, %s17
        %p1289 = scmp.lt.s32.totalorder %s1288, 31
        %s1290 = scalar_select %p1289, %s1288, 31
        %s1291 = smul.addr %s1290, 8
        %s1292 = scalar_lea.vmem %s4, %s1291
      $region52: #{tpu_custom_call.1} parent=43 // pred_fallthru
        _
    $region44: #{tpu_custom_call.1} parent=5 // pred_fallthru
      _
  $region6: #{tpu_custom_call.1} parent=0 // loop_footer
    %s15 = sadd.s32 1, %s11
  $region7: #{tpu_custom_call.1} parent=0 // loop_footer_branch
    %10 = sbr.rel target = $region3
  $region8: #{tpu_custom_call.1} parent=0 // loop_exit
    _

</llo_original>
